<compile_context>
chip_gen: v7x
topology: tpu7x:2x2x1
jax: 0.10.0
libtpu: 0.0.40
codegen_flags: <defaults>
</compile_context>

<pallas_src>
import functools

import jax
import jax.numpy as jnp
from jax.experimental import pallas as pl
from jax.experimental.pallas import tpu as pltpu

_MIB = 1024 * 1024


# --------------------------------------------------------------------------- #
# Kernels
# --------------------------------------------------------------------------- #
def _cse_fused_kernel(u_ref, w1t_ref, w2t_ref, o_ref, *, inv_hw, mm_precision):
    """One pass: pool + excitation + gate multiply on an (nb, C, HW) block."""
    nb = u_ref.shape[0]
    u = u_ref[...]

    # Global pooling along the lane (HW) axis, f32 accumulation for the sum.
    pooled_avg = jnp.sum(u, axis=-1, dtype=jnp.float32) * jnp.float32(inv_hw)
    pooled_max = jnp.max(u, axis=-1).astype(jnp.float32)              # (nb, C)

    # Both excitation paths in ONE pair of MXU matmuls on a stacked (2*nb, C).
    p2 = jnp.concatenate([pooled_avg, pooled_max], axis=0)            # (2nb, C)
    z1 = jnp.dot(p2, w1t_ref[...], preferred_element_type=jnp.float32,
                 precision=mm_precision)                              # (2nb, C//2)
    z2 = jnp.dot(z1, w2t_ref[...], preferred_element_type=jnp.float32,
                 precision=mm_precision)                              # (2nb, C)

    sig = pl.reciprocal(1.0 + jnp.exp(-z2), approx=False)             # sigmoid
    gate = (sig[:nb] + sig[nb:]).astype(o_ref.dtype)[:, :, None]      # (nb, C, 1)

    # Re-read u_ref for the store (short live range across the excitation).
    o_ref[...] = u_ref[...] * gate


def _cse_gate_kernel(u_ref, w1t_ref, w2t_ref, gate_ref, sum_acc, max_acc, *,
                     inv_hw, mm_precision):
    """Split path, kernel A: HW-tiled pooling + excitation -> (N, C) gate."""
    t = pl.program_id(0)

    @pl.when(t == 0)
    def _init():
        sum_acc[...] = jnp.zeros_like(sum_acc)
        max_acc[...] = jnp.full_like(max_acc, -jnp.inf)

    u = u_ref[...]                                                    # (N, C, hw_t)
    sum_acc[...] += jnp.sum(u, axis=-1, dtype=jnp.float32)
    max_acc[...] = jnp.maximum(max_acc[...], jnp.max(u, axis=-1).astype(jnp.float32))

    @pl.when(t == pl.num_programs(0) - 1)
    def _finalize():
        n = gate_ref.shape[0]
        pooled_avg = sum_acc[...] * jnp.float32(inv_hw)
        p2 = jnp.concatenate([pooled_avg, max_acc[...]], axis=0)      # (2N, C)
        z1 = jnp.dot(p2, w1t_ref[...], preferred_element_type=jnp.float32,
                     precision=mm_precision)
        z2 = jnp.dot(z1, w2t_ref[...], preferred_element_type=jnp.float32,
                     precision=mm_precision)
        sig = pl.reciprocal(1.0 + jnp.exp(-z2), approx=False)
        gate_ref[...] = sig[:n] + sig[n:]                             # (N, C) f32


def _cse_scale_kernel(u_ref, gate_ref, o_ref):
    """Split path, kernel B: out[row, :] = U[row, :] * gate[row] (row/lane tiled)."""
    o_ref[...] = u_ref[...] * gate_ref[...].astype(o_ref.dtype)


# --------------------------------------------------------------------------- #
# Wrapper-side sizing helpers (all trace-time Python)
# --------------------------------------------------------------------------- #
def _vmem_budgets():
    try:
        cap = int(pltpu.get_tpu_info().vmem_capacity_bytes)
    except Exception:  # pragma: no cover - conservative fallback
        cap = 64 * _MIB
    if cap >= 96 * _MIB:          # v5e / v6e class: 128 MiB per TensorCore
        return 48 * _MIB, 100 * _MIB
    return 24 * _MIB, 52 * _MIB   # v7x class: 64 MiB per TC, leave Mosaic headroom


def _clamp_limit(needed, limit_cap):
    return int(min(limit_cap, max(32 * _MIB, needed)))


def _divisors_multiple(n, m):
    """Divisors of n that are multiples of m (descending); [n] if none."""
    ds = [d for d in range(m, n + 1, m) if n % d == 0]
    return sorted(ds, reverse=True) if ds else [n]


def _choose_fused_nb(n, bytes_per_img, block_target):
    """Images per grid step: fit budget, keep >= ~4 steps, prefer even grids."""
    nb_budget = max(1, block_target // max(1, bytes_per_img))
    nb_cap = max(1, min(nb_budget, n // 4))              # grid >= ~4 steps
    divs = [d for d in range(1, nb_cap + 1) if n % d == 0]
    even = [d for d in divs if (n // d) % 2 == 0]        # even grid: v7x 2-TC friendly
    return max(even) if even else max(divs)


def _choose_pool_hw_tile(hw, col_bytes, block_target):
    cands = _divisors_multiple(hw, 128) if hw % 128 == 0 else [hw]
    for ht in cands:                                     # largest that fits
        if ht * col_bytes <= block_target:
            return ht
    return cands[-1]


def _choose_mul_tiles(rows, hw, itemsize, block_target):
    pack = 8 * (4 // itemsize)                           # 8 f32 / 16 bf16 / 32 int8
    row_cands = _divisors_multiple(rows, pack) if rows % pack == 0 else [rows]
    hw_cands = _divisors_multiple(hw, 128) if hw % 128 == 0 else [hw]
    max_steps = (rows // row_cands[-1]) * (hw // hw_cands[-1])
    min_steps = min(4, max_steps)                        # enough steps for DMA overlap / 2 TCs
    best, best_key = (row_cands[-1], hw_cands[-1]), None
    for rt in row_cands:
        for ht in hw_cands:
            if rt * ht * itemsize > block_target and (rt, ht) != (row_cands[-1], hw_cands[-1]):
                continue
            steps = (rows // rt) * (hw // ht)
            key = (steps >= min_steps, ht, rt)           # steps first, then lane-dense, then big
            if best_key is None or key > best_key:
                best, best_key = (rt, ht), key
    return best


# --------------------------------------------------------------------------- #
# Forward
# --------------------------------------------------------------------------- #
def cse_forward(u, w_squeeze, w_excite):
    """u: (N, C, H, W); w_squeeze: (C//2, C, 1, 1); w_excite: (C, C//2, 1, 1)."""
    N, C, H, W = u.shape
    HW = H * W
    itemsize = jnp.dtype(u.dtype).itemsize
    pack = 8 * (4 // itemsize)
    c_pad = -(-C // pack) * pack
    hw_pad = -(-HW // 128) * 128
    bytes_per_img = c_pad * hw_pad * itemsize            # padded VMEM footprint / image

    live_budget, limit_cap = _vmem_budgets()
    block_target = min(live_budget // 4, 8 * _MIB)       # roofline plateaus by 2-4 MiB

    # 1x1 conv weights as plain matrices, pre-transposed for row-major matmuls.
    w1t = jnp.transpose(w_squeeze.reshape(C // 2, C)).astype(jnp.float32)  # (C, C//2)
    w2t = jnp.transpose(w_excite.reshape(C, C // 2)).astype(jnp.float32)   # (C//2, C)
    weights_bytes = 2 * (w1t.size + w2t.size) * 4
    mm_prec = jax.lax.Precision.HIGHEST if u.dtype == jnp.float32 else None
    inv_hw = 1.0 / HW

    use_fused = (N >= 4) and (4 * bytes_per_img <= live_budget)

    if use_fused:
        # ---- fused single-pass path: grid over batches of images ---------- #
        u3 = u.reshape(N, C, HW)                          # free, contiguous collapse
        nb = _choose_fused_nb(N, bytes_per_img, block_target)
        needed = 4 * nb * bytes_per_img + weights_bytes + 2 * _MIB
        out3 = pl.pallas_call(
            functools.partial(_cse_fused_kernel, inv_hw=inv_hw, mm_precision=mm_prec),
            out_shape=jax.ShapeDtypeStruct((N, C, HW), u.dtype),
            grid_spec=pltpu.PrefetchScalarGridSpec(
                num_scalar_prefetch=0,
                grid=(N // nb,),
                in_specs=[
                    pl.BlockSpec((nb, C, HW), lambda i: (i, 0, 0)),
                    pl.BlockSpec((C, C // 2), lambda i: (0, 0)),
                    pl.BlockSpec((C // 2, C), lambda i: (0, 0)),
                ],
                out_specs=pl.BlockSpec((nb, C, HW), lambda i: (i, 0, 0)),
            ),
            compiler_params=pltpu.CompilerParams(
                dimension_semantics=("parallel",),
                vmem_limit_bytes=_clamp_limit(needed, limit_cap),
            ),
        )(u3, w1t, w2t)
        return out3.reshape(N, C, H, W)

    # ---- split path: (A) pool + excitation -> gate, (B) tiled multiply ---- #
    u3 = u.reshape(N, C, HW)
    hw_tile_a = _choose_pool_hw_tile(HW, N * c_pad * itemsize, block_target)
    needed_a = 2 * N * c_pad * hw_tile_a * itemsize + weights_bytes + 2 * _MIB
    gate = pl.pallas_call(
        functools.partial(_cse_gate_kernel, inv_hw=inv_hw, mm_precision=mm_prec),
        out_shape=jax.ShapeDtypeStruct((N, C), jnp.float32),
        grid_spec=pltpu.PrefetchScalarGridSpec(
            num_scalar_prefetch=0,
            grid=(HW // hw_tile_a,),
            in_specs=[
                pl.BlockSpec((N, C, hw_tile_a), lambda t: (0, 0, t)),
                pl.BlockSpec((C, C // 2), lambda t: (0, 0)),
                pl.BlockSpec((C // 2, C), lambda t: (0, 0)),
            ],
            out_specs=pl.BlockSpec((N, C), lambda t: (0, 0)),
            scratch_shapes=[pltpu.VMEM((N, C), jnp.float32),   # running sum
                            pltpu.VMEM((N, C), jnp.float32)],  # running max
        ),
        compiler_params=pltpu.CompilerParams(
            dimension_semantics=("arbitrary",),                # HW axis is a reduction
            vmem_limit_bytes=_clamp_limit(needed_a, limit_cap),
        ),
    )(u3, w1t, w2t)

    rows = N * C
    u2 = u.reshape(rows, HW)                              # 2-D: full sublane occupancy
    gate_rows = gate.reshape(rows, 1)
    rt, ht = _choose_mul_tiles(rows, HW, itemsize, block_target)
    rt_pad = -(-rt // pack) * pack
    ht_pad = -(-ht // 128) * 128
    needed_b = 4 * rt_pad * ht_pad * itemsize + 4 * rt_pad * 128 * 4 + 2 * _MIB
    out2 = pl.pallas_call(
        _cse_scale_kernel,
        out_shape=jax.ShapeDtypeStruct((rows, HW), u.dtype),
        grid_spec=pltpu.PrefetchScalarGridSpec(
            num_scalar_prefetch=0,
            grid=(rows // rt, HW // ht),
            in_specs=[
                pl.BlockSpec((rt, ht), lambda r, h: (r, h)),
                pl.BlockSpec((rt, 1), lambda r, h: (r, 0)),
            ],
            out_specs=pl.BlockSpec((rt, ht), lambda r, h: (r, h)),
        ),
        compiler_params=pltpu.CompilerParams(
            dimension_semantics=("parallel", "parallel"),
            vmem_limit_bytes=_clamp_limit(needed_b, limit_cap),
        ),
    )(u2, gate_rows)
    return out2.reshape(N, C, H, W)


# --------------------------------------------------------------------------- #
# Pure-JAX reference (matches the PyTorch module)
# --------------------------------------------------------------------------- #
def cse_reference(u, w_squeeze, w_excite):
    N, C, H, W = u.shape
    w1 = w_squeeze.reshape(C // 2, C).astype(jnp.float32)
    w2 = w_excite.reshape(C, C // 2).astype(jnp.float32)
    prec = jax.lax.Precision.HIGHEST

    def path(pooled):                                     # pooled: (N, C) f32
        z1 = jnp.matmul(pooled, w1.T, precision=prec)
        z2 = jnp.matmul(z1, w2.T, precision=prec)
        return jax.nn.sigmoid(z2)

    z = path(jnp.mean(u.astype(jnp.float32), axis=(2, 3)))
    x = path(jnp.max(u, axis=(2, 3)).astype(jnp.float32))
    gate = (z + x)[:, :, None, None].astype(u.dtype)
    return u * gate


if __name__ == "__main__":
    key = jax.random.PRNGKey(0)

    def check(N, C, H, W):
        k_u, k_w1, k_w2 = jax.random.split(jax.random.fold_in(key, N * 1000 + C), 3)
        U = jax.random.normal(k_u, (N, C, H, W), dtype=jnp.float32)
        # Shapes from nn.Conv2d(..., kernel_size=1, bias=False).
        w_sq = jax.random.normal(k_w1, (C // 2, C, 1, 1), dtype=jnp.float32) * 0.5
        w_ex = jax.random.normal(k_w2, (C, C // 2, 1, 1), dtype=jnp.float32) * 0.5
        out = jax.block_until_ready(cse_forward(U, w_sq, w_ex))
        ref = cse_reference(U, w_sq, w_ex)
        assert out.shape == (N, C, H, W)
        assert jnp.allclose(out, ref, atol=1e-4, rtol=1e-4), (
            f"mismatch vs reference at shape {(N, C, H, W)}")

    check(2, 4, 16, 16)   # small N  -> split path (gate kernel + tiled multiply)
    check(8, 16, 8, 8)    # N >= 4   -> fused single-pass path (even grid of 4)
    print("KERNEL_OK")
</pallas_src>

<mosaic_0001>
module attributes {stable_mosaic.version = 11 : i64} {
  func.func @_cse_gate_kernel(%arg0: i32, %arg1: memref<2x4x256xf32, #tpu.memory_space<vmem>>, %arg2: memref<4x2xf32, #tpu.memory_space<vmem>>, %arg3: memref<2x4xf32, #tpu.memory_space<vmem>>, %arg4: memref<2x4xf32, #tpu.memory_space<vmem>>, %arg5: memref<2x4xf32, #tpu.memory_space<vmem>>, %arg6: memref<2x4xf32, #tpu.memory_space<vmem>>) attributes {dimension_semantics = [#tpu.dimension_semantics<arbitrary>], iteration_bounds = array<i64: 1>, scalar_prefetch = 0 : i64, scratch_operands = 2 : i64, tpu.core_type = #tpu.core_type<tc>, window_params = [{transform_indices = @transform_0, window_bounds = array<i64: 2, 4, 256>}, {pipeline_mode = #tpu.pipeline_mode<synchronous>, transform_indices = @transform_1, window_bounds = array<i64: 4, 2>}, {pipeline_mode = #tpu.pipeline_mode<synchronous>, transform_indices = @transform_2, window_bounds = array<i64: 2, 4>}, {pipeline_mode = #tpu.pipeline_mode<synchronous>, transform_indices = @transform_3, window_bounds = array<i64: 2, 4>}]} {
    %c0_i32 = arith.constant 0 : i32
    %0 = arith.cmpi eq, %arg0, %c0_i32 : i32
    %1 = arith.extui %0 : i1 to i32
    %c0_i32_0 = arith.constant 0 : i32
    %2 = arith.cmpi ne, %1, %c0_i32_0 : i32
    scf.if %2 {
      %cst_14 = arith.constant 0.000000e+00 : f32
      %15 = vector.broadcast %cst_14 : f32 to vector<2x4xf32>
      %c0_15 = arith.constant 0 : index
      %c0_16 = arith.constant 0 : index
      %16 = vector.load %arg5[%c0_15, %c0_16] : memref<2x4xf32, #tpu.memory_space<vmem>>, vector<2x4xf32>
      tpu.vector_store %arg5[%c0_15, %c0_16], %15 {strides = array<i32>} : memref<2x4xf32, #tpu.memory_space<vmem>>, vector<2x4xf32>,
      %cst_17 = arith.constant 0xFF800000 : f32
      %17 = vector.broadcast %cst_17 : f32 to vector<2x4xf32>
      %c0_18 = arith.constant 0 : index
      %c0_19 = arith.constant 0 : index
      %18 = vector.load %arg6[%c0_18, %c0_19] : memref<2x4xf32, #tpu.memory_space<vmem>>, vector<2x4xf32>
      tpu.vector_store %arg6[%c0_18, %c0_19], %17 {strides = array<i32>} : memref<2x4xf32, #tpu.memory_space<vmem>>, vector<2x4xf32>,
    } else {
    }
    %c0 = arith.constant 0 : index
    %c0_1 = arith.constant 0 : index
    %c0_2 = arith.constant 0 : index
    %3 = vector.load %arg1[%c0, %c0_1, %c0_2] : memref<2x4x256xf32, #tpu.memory_space<vmem>>, vector<2x4x256xf32>
    %c0_3 = arith.constant 0 : index
    %c0_4 = arith.constant 0 : index
    %4 = vector.load %arg5[%c0_3, %c0_4] : memref<2x4xf32, #tpu.memory_space<vmem>>, vector<2x4xf32>
    %cst = arith.constant dense<0.000000e+00> : vector<2x4xf32>
    %5 = vector.multi_reduction <add>, %3, %cst [2] : vector<2x4x256xf32> to vector<2x4xf32>
    %6 = arith.addf %4, %5 : vector<2x4xf32>
    %c0_5 = arith.constant 0 : index
    %c0_6 = arith.constant 0 : index
    %7 = vector.load %arg5[%c0_5, %c0_6] : memref<2x4xf32, #tpu.memory_space<vmem>>, vector<2x4xf32>
    tpu.vector_store %arg5[%c0_5, %c0_6], %6 {strides = array<i32>} : memref<2x4xf32, #tpu.memory_space<vmem>>, vector<2x4xf32>,
    %c0_7 = arith.constant 0 : index
    %c0_8 = arith.constant 0 : index
    %8 = vector.load %arg6[%c0_7, %c0_8] : memref<2x4xf32, #tpu.memory_space<vmem>>, vector<2x4xf32>
    %cst_9 = arith.constant dense<0xFF800000> : vector<2x4xf32>
    %9 = vector.multi_reduction <maximumf>, %3, %cst_9 [2] : vector<2x4x256xf32> to vector<2x4xf32>
    %10 = arith.maximumf %8, %9 : vector<2x4xf32>
    %c0_10 = arith.constant 0 : index
    %c0_11 = arith.constant 0 : index
    %11 = vector.load %arg6[%c0_10, %c0_11] : memref<2x4xf32, #tpu.memory_space<vmem>>, vector<2x4xf32>
    tpu.vector_store %arg6[%c0_10, %c0_11], %10 {strides = array<i32>} : memref<2x4xf32, #tpu.memory_space<vmem>>, vector<2x4xf32>,
    %c0_i32_12 = arith.constant 0 : i32
    %12 = arith.cmpi eq, %arg0, %c0_i32_12 : i32
    %13 = arith.extui %12 : i1 to i32
    %c0_i32_13 = arith.constant 0 : i32
    %14 = arith.cmpi ne, %13, %c0_i32_13 : i32
    scf.if %14 {
      %c0_14 = arith.constant 0 : index
      %c0_15 = arith.constant 0 : index
      %15 = vector.load %arg5[%c0_14, %c0_15] : memref<2x4xf32, #tpu.memory_space<vmem>>, vector<2x4xf32>
      %cst_16 = arith.constant 3.906250e-03 : f32
      %16 = vector.broadcast %cst_16 : f32 to vector<2x4xf32>
      %17 = arith.mulf %15, %16 : vector<2x4xf32>
      %c0_17 = arith.constant 0 : index
      %c0_18 = arith.constant 0 : index
      %18 = vector.load %arg6[%c0_17, %c0_18] : memref<2x4xf32, #tpu.memory_space<vmem>>, vector<2x4xf32>
      %19 = tpu.concatenate %17, %18 in 0 : vector<2x4xf32>, vector<2x4xf32> -> vector<4x4xf32>
      %c0_19 = arith.constant 0 : index
      %c0_20 = arith.constant 0 : index
      %20 = vector.load %arg2[%c0_19, %c0_20] : memref<4x2xf32, #tpu.memory_space<vmem>>, vector<4x2xf32>
      %cst_21 = arith.constant dense<0.000000e+00> : vector<4x2xf32>
      %21 = tpu.matmul %19, %20, %cst_21 {dimension_numbers = #tpu.dot_dimension_numbers<[1], [0], [0], [1], [0, 0, 1, 1], [], []>, precision = #tpu.contract_precision<fp32>} : vector<4x4xf32>, vector<4x2xf32>, vector<4x2xf32> -> vector<4x2xf32>
      %c0_22 = arith.constant 0 : index
      %c0_23 = arith.constant 0 : index
      %22 = vector.load %arg3[%c0_22, %c0_23] : memref<2x4xf32, #tpu.memory_space<vmem>>, vector<2x4xf32>
      %cst_24 = arith.constant dense<0.000000e+00> : vector<4x4xf32>
      %23 = tpu.matmul %21, %22, %cst_24 {dimension_numbers = #tpu.dot_dimension_numbers<[1], [0], [0], [1], [0, 0, 1, 1], [], []>, precision = #tpu.contract_precision<fp32>} : vector<4x2xf32>, vector<2x4xf32>, vector<4x4xf32> -> vector<4x4xf32>
      %cst_25 = arith.constant 0.000000e+00 : f32
      %24 = vector.broadcast %cst_25 : f32 to vector<4x4xf32>
      %25 = arith.subf %24, %23 : vector<4x4xf32>
      %26 = math.exp %25 : vector<4x4xf32>
      %cst_26 = arith.constant 1.000000e+00 : f32
      %27 = vector.broadcast %cst_26 : f32 to vector<4x4xf32>
      %28 = arith.addf %27, %26 : vector<4x4xf32>
      %29 = tpu.reciprocal %28 : vector<4x4xf32> -> vector<4x4xf32>
      %30 = vector.extract_strided_slice %29 {offsets = [0, 0], sizes = [2, 4], strides = [1, 1]} : vector<4x4xf32> to vector<2x4xf32>
      %31 = vector.extract_strided_slice %29 {offsets = [2, 0], sizes = [2, 4], strides = [1, 1]} : vector<4x4xf32> to vector<2x4xf32>
      %32 = arith.addf %30, %31 : vector<2x4xf32>
      %c0_27 = arith.constant 0 : index
      %c0_28 = arith.constant 0 : index
      %33 = vector.load %arg4[%c0_27, %c0_28] : memref<2x4xf32, #tpu.memory_space<vmem>>, vector<2x4xf32>
      tpu.vector_store %arg4[%c0_27, %c0_28], %32 {strides = array<i32>} : memref<2x4xf32, #tpu.memory_space<vmem>>, vector<2x4xf32>,
    } else {
    }
    return
  }
  func.func @transform_0(%arg0: i32) -> (i32, i32, i32) {
    %c0_i32 = arith.constant 0 : i32
    %c0_i32_0 = arith.constant 0 : i32
    %c0_i32_1 = arith.constant 0 : i32
    return %c0_i32, %c0_i32_0, %arg0 : i32, i32, i32
  }
  func.func @transform_1(%arg0: i32) -> (i32, i32) {
    %c0_i32 = arith.constant 0 : i32
    %c0_i32_0 = arith.constant 0 : i32
    %c0_i32_1 = arith.constant 0 : i32
    return %c0_i32, %c0_i32_0 : i32, i32
  }
  func.func @transform_2(%arg0: i32) -> (i32, i32) {
    %c0_i32 = arith.constant 0 : i32
    %c0_i32_0 = arith.constant 0 : i32
    %c0_i32_1 = arith.constant 0 : i32
    return %c0_i32, %c0_i32_0 : i32, i32
  }
  func.func @transform_3(%arg0: i32) -> (i32, i32) {
    %c0_i32 = arith.constant 0 : i32
    %c0_i32_0 = arith.constant 0 : i32
    %c0_i32_1 = arith.constant 0 : i32
    return %c0_i32, %c0_i32_0 : i32, i32
  }
}

</mosaic_0001>

<llo_original>
// kernel: tpu_custom_call.1
$region0: #{tpu_custom_call.1}
  #allocation0 [shape = 'u32[]', space=smem, size = 0x4, offset = 0x4, fixed_abs, tag = 'smem constant byte address 0x4 - core index']
  #allocation1 [shape = 'u32[144,128]{1,0:T(1,128)}', space=vmem, size = 0x12000, scoped, tag = 'internal scratch']
  #allocation2 [shape = 'f32[2,4]{1,0:T(2,128)}', space=vmem, size = 0x400, scoped, tag = 'scratch operand']
  #allocation3 [shape = 'f32[2,4]{1,0:T(2,128)}', space=vmem, size = 0x400, scoped, tag = 'scratch operand']
  %s0 = inlined_call_operand.hbm [shape: f32[2,4,256], index: 0, kind: input, shape index: {}]
  %s1 = inlined_call_operand.vmem [shape: f32[4,2], index: 1, kind: input, shape index: {}]
  %s2 = inlined_call_operand.vmem [shape: f32[2,4], index: 2, kind: input, shape index: {}]
  %s3 = inlined_call_operand.hbm [shape: f32[2,4], index: 3, kind: output, shape index: {}]
  %s4 = sld [smem:[#allocation0]]
  $region34: #{tpu_custom_call.1} parent=0
    _
  %s6 = ssub.s32 1, %s4
  %s7 = scalar_select 0, %s6, %s4
  $region1: #{tpu_custom_call.1} parent=0
    #allocation4 [shape = 'u8[8192]{0}', space=vmem, size = 0x2000, scoped, tag = 'input window, operand 0, single buffered']
    #allocation5 [shape = 's32[1]{0}', space=sflag, size = 0x4, scoped, tag = 'scoped memory for tpu_custom_call.1']
    #allocation6 [shape = 's32[1]{0}', space=sflag, size = 0x4, scoped, tag = 'scoped memory for tpu_custom_call.1']
    #allocation7 [shape = 'u8[1024]{0}', space=vmem, size = 0x400, scoped, tag = 'output window, operand 0, single buffered']
    %8 = vsyncpa [#allocation5], 0
    %9 = vsyncpa [#allocation6], 0
    // Predicated region
    $region2: #{tpu_custom_call.1} parent=1 // pred_check
      _
    $region3: #{tpu_custom_call.1} parent=1 // pred_check_branch
      %11 = sbr.rel (0) target = $region5
    $region4: #{tpu_custom_call.1} parent=1 // pred_region
      %s13 = ssub.s32 256, 256
      %14 = vsyncadd [#allocation5], %s13
      %s15 = sshll.u32 [#allocation4], 4
      %s16 = int_to_ptr.vmem [resolvable:$true] %s15
      %21 = dma.hbm_to_vmem [thread:$0]  %s0, 256, %s16, [#allocation5], 128, 128, 8
    $region5: #{tpu_custom_call.1} parent=1 // pred_fallthru
      _
    // Predicated region
    $region6: #{tpu_custom_call.1} parent=1 // pred_check
      _
    $region7: #{tpu_custom_call.1} parent=1 // pred_check_branch
      %23 = sbr.rel (0) target = $region9
    $region8: #{tpu_custom_call.1} parent=1 // pred_region
      _
    $region9: #{tpu_custom_call.1} parent=1 // pred_fallthru
      _
    // Predicated region
    $region10: #{tpu_custom_call.1} parent=1 // pred_check
      _
    $region11: #{tpu_custom_call.1} parent=1 // pred_check_branch
      %25 = sbr.rel (0) target = $region13
    $region12: #{tpu_custom_call.1} parent=1 // pred_region
      _
    $region13: #{tpu_custom_call.1} parent=1 // pred_fallthru
      _
    // Predicated region
    $region14: #{tpu_custom_call.1} parent=1 // pred_check
      _
    $region15: #{tpu_custom_call.1} parent=1 // pred_check_branch
      %27 = sbr.rel (0) target = $region17
    $region16: #{tpu_custom_call.1} parent=1 // pred_region
      %28 = dma.done [#allocation5], 256
    $region17: #{tpu_custom_call.1} parent=1 // pred_fallthru
      _
    %p29 = scmp.eq.s32.totalorder 0, 0
    // Predicated region
    $region18: #{tpu_custom_call.1} parent=1 // pred_check
      %p30 = pneg %p29
    $region19: #{tpu_custom_call.1} parent=1 // pred_check_branch
      %32 = sbr.rel (%p30) target = $region21
    $region20: #{tpu_custom_call.1} parent=1 // pred_region
      %vm33 = vcmask 25600
      %34 = vst.msk [vmem:[#allocation2] sm:$0x3] %vm33, 0.0
      %35 = vst.msk [vmem:[#allocation3] sm:$0x3] %vm33, -inf
    $region21: #{tpu_custom_call.1} parent=1 // pred_fallthru
      _
    %v36 = vld [vmem:[#allocation4] sm:$0xff]
    %v37 = vld [vmem:[#allocation4 + $0x8] sm:$0xff]
    %v38 = vld [vmem:[#allocation2] sm:$0x3]
    %v41 = vcombine.high %v36, %v36
    %v42 = vcombine.high %v37, %v37
    %vm45 = vcmask 1043456
    %v46 = vsel %vm45, %v36, 0.0
    %v47 = vsel %vm45, %v41, 0.0
    %v48 = vadd.f32 %v46, %v47
    %49 = vadd.xlane.f32.xlu0 %v48
    %v50 = vpop.xlane.xlu0 %49
    %v51 = vsel %vm45, %v37, 0.0
    %v52 = vsel %vm45, %v42, 0.0
    %v53 = vadd.f32 %v51, %v52
    %54 = vadd.xlane.f32.xlu0 %v53
    %v55 = vpop.xlane.xlu0 %54
    %v58 = vlaneseq
    %v59 = vand.u32 %v58, 127
    %v60 = vlaneseq
    %v61 = vshrl.u32 %v60, 7
    %v62 = vsub.s32 %v59, %v61
    %v63 = vrot.slane %v50, %v62
    %v64 = vlaneseq
    %v65 = vshrl.u32 %v64, 7
    %v66 = vsub.s32 %v59, %v65
    %v67 = vrot.slane %v55, %v66
    %vm68 = vcmask 1041409
    %v69 = vsel %vm68, %v67, %v63
    %v71 = vadd.f32 %v38, %v69
    %vm72 = vcmask 25600
    %73 = vst.msk [vmem:[#allocation2] sm:$0x3] %vm72, %v71
    %v74 = vld [vmem:[#allocation3] sm:$0x3]
    %v75 = vsel %vm45, %v36, -inf
    %v76 = vsel %vm45, %v41, -inf
    %v77 = vmax.f32 %v75, %v76
    %78 = vmax.xlane.f32.xlu0 %v77
    %v79 = vpop.xlane.xlu0 %78
    %v80 = vsel %vm45, %v37, -inf
    %v81 = vsel %vm45, %v42, -inf
    %v82 = vmax.f32 %v80, %v81
    %83 = vmax.xlane.f32.xlu0 %v82
    %v84 = vpop.xlane.xlu0 %83
    %v87 = vlaneseq
    %v88 = vshrl.u32 %v87, 7
    %v89 = vsub.s32 %v59, %v88
    %v90 = vrot.slane %v79, %v89
    %v91 = vlaneseq
    %v92 = vshrl.u32 %v91, 7
    %v93 = vsub.s32 %v59, %v92
    %v94 = vrot.slane %v84, %v93
    %v95 = vsel %vm68, %v94, %v90
    %v97 = vmax.f32 %v74, %v95
    %98 = vst.msk [vmem:[#allocation3] sm:$0x3] %vm72, %v97
    // Predicated region
    $region22: #{tpu_custom_call.1} parent=1 // pred_check
      %p99 = pneg %p29
    $region23: #{tpu_custom_call.1} parent=1 // pred_check_branch
      %101 = sbr.rel (%p99) target = $region25
    $region24: #{tpu_custom_call.1} parent=1 // pred_region
      %v102 = vld [vmem:[#allocation2] sm:$0x3]
      %v103 = vmul.f32 %v102, 0.00390625
      %v104 = vld [vmem:[#allocation3] sm:$0x3]
      %v106 = vrot.slane %v104, 6
      %vm108 = vcmask 1041408
      %v109 = vsel %vm108, %v103, %v106
      %v110 = vld [vmem:[%s1] sm:$0xf]
      %vm111 = vcmask 31744
      %v113 = vsel %vm111, %v109, 0
      %v116 = vsel %vm45, %v110, 0
      %118 = vmatprep.subr.mxu0 0.0
      %v119 = vand.u32 %v116, 4294901760
      %120 = vmatpush1.msra.mxu0 %v119
      %121 = vmatprep.subr.mxu0 0.0
      %122 = vmatpush1.msra.mxu0 0.0
      %123 = vmatprep.subr.mxu0 0.0
      %124 = vmatpush1.msra.mxu0 0.0
      %125 = vmatprep.subr.mxu0 0.0
      %126 = vmatpush1.msra.mxu0 0.0
      %127 = vmatprep.subr.mxu0 0.0
      %128 = vmatpush1.msra.mxu0 0.0
      %129 = vmatprep.subr.mxu0 0.0
      %130 = vmatpush1.msra.mxu0 0.0
      %131 = vmatprep.subr.mxu0 0.0
      %132 = vmatpush1.msra.mxu0 0.0
      %133 = vmatprep.subr.mxu0 0.0
      %134 = vmatpush1.msra.mxu0 0.0
      %135 = vmatprep.subr.mxu0 0.0
      %136 = vmatpush1.msra.mxu0 0.0
      %137 = vmatprep.subr.mxu0 0.0
      %138 = vmatpush1.msra.mxu0 0.0
      %139 = vmatprep.subr.mxu0 0.0
      %140 = vmatpush1.msra.mxu0 0.0
      %141 = vmatprep.subr.mxu0 0.0
      %142 = vmatpush1.msra.mxu0 0.0
      %143 = vmatprep.subr.mxu0 0.0
      %144 = vmatpush1.msra.mxu0 0.0
      %145 = vmatprep.subr.mxu0 0.0
      %146 = vmatpush1.msra.mxu0 0.0
      %147 = vmatprep.subr.mxu0 0.0
      %148 = vmatpush1.msra.mxu0 0.0
      %149 = vmatprep.subr.mxu0 0.0
      %150 = vmatpush1.msra.mxu0 0.0
      %151 = vmatprep.subr.mxu0 0.0
      %152 = vmatpush1.msra.mxu0 0.0
      %153 = vmatprep.subr.mxu0 0.0
      %154 = vmatpush1.msra.mxu0 0.0
      %155 = vmatprep.subr.mxu0 0.0
      %156 = vmatpush1.msra.mxu0 0.0
      %157 = vmatprep.subr.mxu0 0.0
      %158 = vmatpush1.msra.mxu0 0.0
      %159 = vmatprep.subr.mxu0 0.0
      %160 = vmatpush1.msra.mxu0 0.0
      %161 = vmatprep.subr.mxu0 0.0
      %162 = vmatpush1.msra.mxu0 0.0
      %163 = vmatprep.subr.mxu0 0.0
      %164 = vmatpush1.msra.mxu0 0.0
      %165 = vmatprep.subr.mxu0 0.0
      %166 = vmatpush1.msra.mxu0 0.0
      %167 = vmatprep.subr.mxu0 0.0
      %168 = vmatpush1.msra.mxu0 0.0
      %169 = vmatprep.subr.mxu0 0.0
      %170 = vmatpush1.msra.mxu0 0.0
      %171 = vmatprep.subr.mxu0 0.0
      %172 = vmatpush1.msra.mxu0 0.0
      %173 = vmatprep.subr.mxu0 0.0
      %174 = vmatpush1.msra.mxu0 0.0
      %175 = vmatprep.subr.mxu0 0.0
      %176 = vmatpush1.msra.mxu0 0.0
      %177 = vmatprep.subr.mxu0 0.0
      %178 = vmatpush1.msra.mxu0 0.0
      %179 = vmatprep.subr.mxu0 0.0
      %180 = vmatpush1.msra.mxu0 0.0
      %181 = vmatprep.subr.mxu0 0.0
      %182 = vmatpush1.msra.mxu0 0.0
      %183 = vmatprep.mubr.f32.mxu0 0.0
      %v184 = vand.u32 %v113, 4294901760
      %v185 = vsub.f32 %v113, %v184
      %v186 = vand.u32 %v185, 4294901760
      %v187 = vsub.f32 %v185, %v186
      %v188 = vand.u32 %v187, 4294901760
      %189 = vmatmul.mubr.f32.gmra.mrb[0].mxu0 %v188
      %v190 = vpop.f32.mrb[0].mxu0
      %v191 = vadd.f32 0.0, %v190
      %v192 = vpop.f32.mrb[0].mxu0
      %193 = vdwg.mxu0
      %194 = vmatprep.subr.mxu0 0.0
      %v195 = vand.u32 %v116, 4294901760
      %v196 = vsub.f32 %v116, %v195
      %v197 = vand.u32 %v196, 4294901760
      %v198 = vsub.f32 %v196, %v197
      %v199 = vand.u32 %v198, 4294901760
      %200 = vmatpush1.msra.mxu0 %v199
      %201 = vmatprep.subr.mxu0 0.0
      %202 = vmatpush1.msra.mxu0 0.0
      %203 = vmatprep.subr.mxu0 0.0
      %204 = vmatpush1.msra.mxu0 0.0
      %205 = vmatprep.subr.mxu0 0.0
      %206 = vmatpush1.msra.mxu0 0.0
      %207 = vmatprep.subr.mxu0 0.0
      %208 = vmatpush1.msra.mxu0 0.0
      %209 = vmatprep.subr.mxu0 0.0
      %210 = vmatpush1.msra.mxu0 0.0
      %211 = vmatprep.subr.mxu0 0.0
      %212 = vmatpush1.msra.mxu0 0.0
      %213 = vmatprep.subr.mxu0 0.0
      %214 = vmatpush1.msra.mxu0 0.0
      %215 = vmatprep.subr.mxu0 0.0
      %216 = vmatpush1.msra.mxu0 0.0
      %217 = vmatprep.subr.mxu0 0.0
      %218 = vmatpush1.msra.mxu0 0.0
      %219 = vmatprep.subr.mxu0 0.0
      %220 = vmatpush1.msra.mxu0 0.0
      %221 = vmatprep.subr.mxu0 0.0
      %222 = vmatpush1.msra.mxu0 0.0
      %223 = vmatprep.subr.mxu0 0.0
      %224 = vmatpush1.msra.mxu0 0.0
      %225 = vmatprep.subr.mxu0 0.0
      %226 = vmatpush1.msra.mxu0 0.0
      %227 = vmatprep.subr.mxu0 0.0
      %228 = vmatpush1.msra.mxu0 0.0
      %229 = vmatprep.subr.mxu0 0.0
      %230 = vmatpush1.msra.mxu0 0.0
      %231 = vmatprep.subr.mxu0 0.0
      %232 = vmatpush1.msra.mxu0 0.0
      %233 = vmatprep.subr.mxu0 0.0
      %234 = vmatpush1.msra.mxu0 0.0
      %235 = vmatprep.subr.mxu0 0.0
      %236 = vmatpush1.msra.mxu0 0.0
      %237 = vmatprep.subr.mxu0 0.0
      %238 = vmatpush1.msra.mxu0 0.0
      %239 = vmatprep.subr.mxu0 0.0
      %240 = vmatpush1.msra.mxu0 0.0
      %241 = vmatprep.subr.mxu0 0.0
      %242 = vmatpush1.msra.mxu0 0.0
      %243 = vmatprep.subr.mxu0 0.0
      %244 = vmatpush1.msra.mxu0 0.0
      %245 = vmatprep.subr.mxu0 0.0
      %246 = vmatpush1.msra.mxu0 0.0
      %247 = vmatprep.subr.mxu0 0.0
      %248 = vmatpush1.msra.mxu0 0.0
      %249 = vmatprep.subr.mxu0 0.0
      %250 = vmatpush1.msra.mxu0 0.0
      %251 = vmatprep.subr.mxu0 0.0
      %252 = vmatpush1.msra.mxu0 0.0
      %253 = vmatprep.subr.mxu0 0.0
      %254 = vmatpush1.msra.mxu0 0.0
      %255 = vmatprep.subr.mxu0 0.0
      %256 = vmatpush1.msra.mxu0 0.0
      %257 = vmatprep.subr.mxu0 0.0
      %258 = vmatpush1.msra.mxu0 0.0
      %259 = vmatprep.subr.mxu0 0.0
      %260 = vmatpush1.msra.mxu0 0.0
      %261 = vmatprep.subr.mxu0 0.0
      %262 = vmatpush1.msra.mxu0 0.0
      %263 = vmatprep.mubr.f32.mxu0 0.0
      %v264 = vand.u32 %v113, 4294901760
      %265 = vmatmul.mubr.f32.gmra.mrb[0].mxu0 %v264
      %v266 = vpop.f32.mrb[0].mxu0
      %v267 = vadd.f32 %v191, %v266
      %v268 = vpop.f32.mrb[0].mxu0
      %269 = vdwg.mxu0
      %270 = vmatprep.subr.mxu0 0.0
      %v271 = vand.u32 %v116, 4294901760
      %v272 = vsub.f32 %v116, %v271
      %273 = vmatpush1.msra.mxu0 %v272
      %274 = vmatprep.subr.mxu0 0.0
      %275 = vmatpush1.msra.mxu0 0.0
      %276 = vmatprep.subr.mxu0 0.0
      %277 = vmatpush1.msra.mxu0 0.0
      %278 = vmatprep.subr.mxu0 0.0
      %279 = vmatpush1.msra.mxu0 0.0
      %280 = vmatprep.subr.mxu0 0.0
      %281 = vmatpush1.msra.mxu0 0.0
      %282 = vmatprep.subr.mxu0 0.0
      %283 = vmatpush1.msra.mxu0 0.0
      %284 = vmatprep.subr.mxu0 0.0
      %285 = vmatpush1.msra.mxu0 0.0
      %286 = vmatprep.subr.mxu0 0.0
      %287 = vmatpush1.msra.mxu0 0.0
      %288 = vmatprep.subr.mxu0 0.0
      %289 = vmatpush1.msra.mxu0 0.0
      %290 = vmatprep.subr.mxu0 0.0
      %291 = vmatpush1.msra.mxu0 0.0
      %292 = vmatprep.subr.mxu0 0.0
      %293 = vmatpush1.msra.mxu0 0.0
      %294 = vmatprep.subr.mxu0 0.0
      %295 = vmatpush1.msra.mxu0 0.0
      %296 = vmatprep.subr.mxu0 0.0
      %297 = vmatpush1.msra.mxu0 0.0
      %298 = vmatprep.subr.mxu0 0.0
      %299 = vmatpush1.msra.mxu0 0.0
      %300 = vmatprep.subr.mxu0 0.0
      %301 = vmatpush1.msra.mxu0 0.0
      %302 = vmatprep.subr.mxu0 0.0
      %303 = vmatpush1.msra.mxu0 0.0
      %304 = vmatprep.subr.mxu0 0.0
      %305 = vmatpush1.msra.mxu0 0.0
      %306 = vmatprep.subr.mxu0 0.0
      %307 = vmatpush1.msra.mxu0 0.0
      %308 = vmatprep.subr.mxu0 0.0
      %309 = vmatpush1.msra.mxu0 0.0
      %310 = vmatprep.subr.mxu0 0.0
      %311 = vmatpush1.msra.mxu0 0.0
      %312 = vmatprep.subr.mxu0 0.0
      %313 = vmatpush1.msra.mxu0 0.0
      %314 = vmatprep.subr.mxu0 0.0
      %315 = vmatpush1.msra.mxu0 0.0
      %316 = vmatprep.subr.mxu0 0.0
      %317 = vmatpush1.msra.mxu0 0.0
      %318 = vmatprep.subr.mxu0 0.0
      %319 = vmatpush1.msra.mxu0 0.0
      %320 = vmatprep.subr.mxu0 0.0
      %321 = vmatpush1.msra.mxu0 0.0
      %322 = vmatprep.subr.mxu0 0.0
      %323 = vmatpush1.msra.mxu0 0.0
      %324 = vmatprep.subr.mxu0 0.0
      %325 = vmatpush1.msra.mxu0 0.0
      %326 = vmatprep.subr.mxu0 0.0
      %327 = vmatpush1.msra.mxu0 0.0
      %328 = vmatprep.subr.mxu0 0.0
      %329 = vmatpush1.msra.mxu0 0.0
      %330 = vmatprep.subr.mxu0 0.0
      %331 = vmatpush1.msra.mxu0 0.0
      %332 = vmatprep.subr.mxu0 0.0
      %333 = vmatpush1.msra.mxu0 0.0
      %334 = vmatprep.subr.mxu0 0.0
      %335 = vmatpush1.msra.mxu0 0.0
      %336 = vmatprep.mubr.f32.mxu0 0.0
      %v337 = vand.u32 %v113, 4294901760
      %v338 = vsub.f32 %v113, %v337
      %339 = vmatmul.mubr.f32.gmra.mrb[0].mxu0 %v338
      %v340 = vpop.f32.mrb[0].mxu0
      %v341 = vadd.f32 %v267, %v340
      %v342 = vpop.f32.mrb[0].mxu0
      %343 = vdwg.mxu0
      %344 = vmatprep.subr.mxu0 0.0
      %v345 = vand.u32 %v116, 4294901760
      %346 = vmatpush1.msra.mxu0 %v345
      %347 = vmatprep.subr.mxu0 0.0
      %348 = vmatpush1.msra.mxu0 0.0
      %349 = vmatprep.subr.mxu0 0.0
      %350 = vmatpush1.msra.mxu0 0.0
      %351 = vmatprep.subr.mxu0 0.0
      %352 = vmatpush1.msra.mxu0 0.0
      %353 = vmatprep.subr.mxu0 0.0
      %354 = vmatpush1.msra.mxu0 0.0
      %355 = vmatprep.subr.mxu0 0.0
      %356 = vmatpush1.msra.mxu0 0.0
      %357 = vmatprep.subr.mxu0 0.0
      %358 = vmatpush1.msra.mxu0 0.0
      %359 = vmatprep.subr.mxu0 0.0
      %360 = vmatpush1.msra.mxu0 0.0
      %361 = vmatprep.subr.mxu0 0.0
      %362 = vmatpush1.msra.mxu0 0.0
      %363 = vmatprep.subr.mxu0 0.0
      %364 = vmatpush1.msra.mxu0 0.0
      %365 = vmatprep.subr.mxu0 0.0
      %366 = vmatpush1.msra.mxu0 0.0
      %367 = vmatprep.subr.mxu0 0.0
      %368 = vmatpush1.msra.mxu0 0.0
      %369 = vmatprep.subr.mxu0 0.0
      %370 = vmatpush1.msra.mxu0 0.0
      %371 = vmatprep.subr.mxu0 0.0
      %372 = vmatpush1.msra.mxu0 0.0
      %373 = vmatprep.subr.mxu0 0.0
      %374 = vmatpush1.msra.mxu0 0.0
      %375 = vmatprep.subr.mxu0 0.0
      %376 = vmatpush1.msra.mxu0 0.0
      %377 = vmatprep.subr.mxu0 0.0
      %378 = vmatpush1.msra.mxu0 0.0
      %379 = vmatprep.subr.mxu0 0.0
      %380 = vmatpush1.msra.mxu0 0.0
      %381 = vmatprep.subr.mxu0 0.0
      %382 = vmatpush1.msra.mxu0 0.0
      %383 = vmatprep.subr.mxu0 0.0
      %384 = vmatpush1.msra.mxu0 0.0
      %385 = vmatprep.subr.mxu0 0.0
      %386 = vmatpush1.msra.mxu0 0.0
      %387 = vmatprep.subr.mxu0 0.0
      %388 = vmatpush1.msra.mxu0 0.0
      %389 = vmatprep.subr.mxu0 0.0
      %390 = vmatpush1.msra.mxu0 0.0
      %391 = vmatprep.subr.mxu0 0.0
      %392 = vmatpush1.msra.mxu0 0.0
      %393 = vmatprep.subr.mxu0 0.0
      %394 = vmatpush1.msra.mxu0 0.0
      %395 = vmatprep.subr.mxu0 0.0
      %396 = vmatpush1.msra.mxu0 0.0
      %397 = vmatprep.subr.mxu0 0.0
      %398 = vmatpush1.msra.mxu0 0.0
      %399 = vmatprep.subr.mxu0 0.0
      %400 = vmatpush1.msra.mxu0 0.0
      %401 = vmatprep.subr.mxu0 0.0
      %402 = vmatpush1.msra.mxu0 0.0
      %403 = vmatprep.subr.mxu0 0.0
      %404 = vmatpush1.msra.mxu0 0.0
      %405 = vmatprep.subr.mxu0 0.0
      %406 = vmatpush1.msra.mxu0 0.0
      %407 = vmatprep.subr.mxu0 0.0
      %408 = vmatpush1.msra.mxu0 0.0
      %409 = vmatprep.mubr.f32.mxu0 0.0
      %v410 = vand.u32 %v113, 4294901760
      %v411 = vsub.f32 %v113, %v410
      %v412 = vand.u32 %v411, 4294901760
      %413 = vmatmul.mubr.f32.gmra.mrb[0].mxu0 %v412
      %v414 = vpop.f32.mrb[0].mxu0
      %v415 = vadd.f32 %v341, %v414
      %v416 = vpop.f32.mrb[0].mxu0
      %417 = vdwg.mxu0
      %418 = vmatprep.subr.mxu0 0.0
      %v419 = vand.u32 %v116, 4294901760
      %v420 = vsub.f32 %v116, %v419
      %v421 = vand.u32 %v420, 4294901760
      %422 = vmatpush1.msra.mxu0 %v421
      %423 = vmatprep.subr.mxu0 0.0
      %424 = vmatpush1.msra.mxu0 0.0
      %425 = vmatprep.subr.mxu0 0.0
      %426 = vmatpush1.msra.mxu0 0.0
      %427 = vmatprep.subr.mxu0 0.0
      %428 = vmatpush1.msra.mxu0 0.0
      %429 = vmatprep.subr.mxu0 0.0
      %430 = vmatpush1.msra.mxu0 0.0
      %431 = vmatprep.subr.mxu0 0.0
      %432 = vmatpush1.msra.mxu0 0.0
      %433 = vmatprep.subr.mxu0 0.0
      %434 = vmatpush1.msra.mxu0 0.0
      %435 = vmatprep.subr.mxu0 0.0
      %436 = vmatpush1.msra.mxu0 0.0
      %437 = vmatprep.subr.mxu0 0.0
      %438 = vmatpush1.msra.mxu0 0.0
      %439 = vmatprep.subr.mxu0 0.0
      %440 = vmatpush1.msra.mxu0 0.0
      %441 = vmatprep.subr.mxu0 0.0
      %442 = vmatpush1.msra.mxu0 0.0
      %443 = vmatprep.subr.mxu0 0.0
      %444 = vmatpush1.msra.mxu0 0.0
      %445 = vmatprep.subr.mxu0 0.0
      %446 = vmatpush1.msra.mxu0 0.0
      %447 = vmatprep.subr.mxu0 0.0
      %448 = vmatpush1.msra.mxu0 0.0
      %449 = vmatprep.subr.mxu0 0.0
      %450 = vmatpush1.msra.mxu0 0.0
      %451 = vmatprep.subr.mxu0 0.0
      %452 = vmatpush1.msra.mxu0 0.0
      %453 = vmatprep.subr.mxu0 0.0
      %454 = vmatpush1.msra.mxu0 0.0
      %455 = vmatprep.subr.mxu0 0.0
      %456 = vmatpush1.msra.mxu0 0.0
      %457 = vmatprep.subr.mxu0 0.0
      %458 = vmatpush1.msra.mxu0 0.0
      %459 = vmatprep.subr.mxu0 0.0
      %460 = vmatpush1.msra.mxu0 0.0
      %461 = vmatprep.subr.mxu0 0.0
      %462 = vmatpush1.msra.mxu0 0.0
      %463 = vmatprep.subr.mxu0 0.0
      %464 = vmatpush1.msra.mxu0 0.0
      %465 = vmatprep.subr.mxu0 0.0
      %466 = vmatpush1.msra.mxu0 0.0
      %467 = vmatprep.subr.mxu0 0.0
      %468 = vmatpush1.msra.mxu0 0.0
      %469 = vmatprep.subr.mxu0 0.0
      %470 = vmatpush1.msra.mxu0 0.0
      %471 = vmatprep.subr.mxu0 0.0
      %472 = vmatpush1.msra.mxu0 0.0
      %473 = vmatprep.subr.mxu0 0.0
      %474 = vmatpush1.msra.mxu0 0.0
      %475 = vmatprep.subr.mxu0 0.0
      %476 = vmatpush1.msra.mxu0 0.0
      %477 = vmatprep.subr.mxu0 0.0
      %478 = vmatpush1.msra.mxu0 0.0
      %479 = vmatprep.subr.mxu0 0.0
      %480 = vmatpush1.msra.mxu0 0.0
      %481 = vmatprep.subr.mxu0 0.0
      %482 = vmatpush1.msra.mxu0 0.0
      %483 = vmatprep.subr.mxu0 0.0
      %484 = vmatpush1.msra.mxu0 0.0
      %485 = vmatprep.mubr.f32.mxu0 0.0
      %v486 = vand.u32 %v113, 4294901760
      %487 = vmatmul.mubr.f32.gmra.mrb[0].mxu0 %v486
      %v488 = vpop.f32.mrb[0].mxu0
      %v489 = vadd.f32 %v415, %v488
      %v490 = vpop.f32.mrb[0].mxu0
      %491 = vdwg.mxu0
      %492 = vmatprep.subr.mxu0 0.0
      %v493 = vand.u32 %v116, 4294901760
      %494 = vmatpush1.msra.mxu0 %v493
      %495 = vmatprep.subr.mxu0 0.0
      %496 = vmatpush1.msra.mxu0 0.0
      %497 = vmatprep.subr.mxu0 0.0
      %498 = vmatpush1.msra.mxu0 0.0
      %499 = vmatprep.subr.mxu0 0.0
      %500 = vmatpush1.msra.mxu0 0.0
      %501 = vmatprep.subr.mxu0 0.0
      %502 = vmatpush1.msra.mxu0 0.0
      %503 = vmatprep.subr.mxu0 0.0
      %504 = vmatpush1.msra.mxu0 0.0
      %505 = vmatprep.subr.mxu0 0.0
      %506 = vmatpush1.msra.mxu0 0.0
      %507 = vmatprep.subr.mxu0 0.0
      %508 = vmatpush1.msra.mxu0 0.0
      %509 = vmatprep.subr.mxu0 0.0
      %510 = vmatpush1.msra.mxu0 0.0
      %511 = vmatprep.subr.mxu0 0.0
      %512 = vmatpush1.msra.mxu0 0.0
      %513 = vmatprep.subr.mxu0 0.0
      %514 = vmatpush1.msra.mxu0 0.0
      %515 = vmatprep.subr.mxu0 0.0
      %516 = vmatpush1.msra.mxu0 0.0
      %517 = vmatprep.subr.mxu0 0.0
      %518 = vmatpush1.msra.mxu0 0.0
      %519 = vmatprep.subr.mxu0 0.0
      %520 = vmatpush1.msra.mxu0 0.0
      %521 = vmatprep.subr.mxu0 0.0
      %522 = vmatpush1.msra.mxu0 0.0
      %523 = vmatprep.subr.mxu0 0.0
      %524 = vmatpush1.msra.mxu0 0.0
      %525 = vmatprep.subr.mxu0 0.0
      %526 = vmatpush1.msra.mxu0 0.0
      %527 = vmatprep.subr.mxu0 0.0
      %528 = vmatpush1.msra.mxu0 0.0
      %529 = vmatprep.subr.mxu0 0.0
      %530 = vmatpush1.msra.mxu0 0.0
      %531 = vmatprep.subr.mxu0 0.0
      %532 = vmatpush1.msra.mxu0 0.0
      %533 = vmatprep.subr.mxu0 0.0
      %534 = vmatpush1.msra.mxu0 0.0
      %535 = vmatprep.subr.mxu0 0.0
      %536 = vmatpush1.msra.mxu0 0.0
      %537 = vmatprep.subr.mxu0 0.0
      %538 = vmatpush1.msra.mxu0 0.0
      %539 = vmatprep.subr.mxu0 0.0
      %540 = vmatpush1.msra.mxu0 0.0
      %541 = vmatprep.subr.mxu0 0.0
      %542 = vmatpush1.msra.mxu0 0.0
      %543 = vmatprep.subr.mxu0 0.0
      %544 = vmatpush1.msra.mxu0 0.0
      %545 = vmatprep.subr.mxu0 0.0
      %546 = vmatpush1.msra.mxu0 0.0
      %547 = vmatprep.subr.mxu0 0.0
      %548 = vmatpush1.msra.mxu0 0.0
      %549 = vmatprep.subr.mxu0 0.0
      %550 = vmatpush1.msra.mxu0 0.0
      %551 = vmatprep.subr.mxu0 0.0
      %552 = vmatpush1.msra.mxu0 0.0
      %553 = vmatprep.subr.mxu0 0.0
      %554 = vmatpush1.msra.mxu0 0.0
      %555 = vmatprep.subr.mxu0 0.0
      %556 = vmatpush1.msra.mxu0 0.0
      %557 = vmatprep.mubr.f32.mxu0 0.0
      %v558 = vand.u32 %v113, 4294901760
      %559 = vmatmul.mubr.f32.gmra.mrb[0].mxu0 %v558
      %v560 = vpop.f32.mrb[0].mxu0
      %v561 = vadd.f32 %v489, %v560
      %v562 = vpop.f32.mrb[0].mxu0
      %563 = vdwg.mxu0
      %v564 = vld [vmem:[%s2] sm:$0x3]
      %vm565 = vcmask 15360
      %v567 = vsel %vm565, %v561, 0
      %v570 = vsel %vm108, %v564, 0
      %572 = vmatprep.subr.mxu0 0.0
      %v573 = vand.u32 %v570, 4294901760
      %574 = vmatpush1.msra.mxu0 %v573
      %575 = vmatprep.subr.mxu0 0.0
      %576 = vmatpush1.msra.mxu0 0.0
      %577 = vmatprep.subr.mxu0 0.0
      %578 = vmatpush1.msra.mxu0 0.0
      %579 = vmatprep.subr.mxu0 0.0
      %580 = vmatpush1.msra.mxu0 0.0
      %581 = vmatprep.subr.mxu0 0.0
      %582 = vmatpush1.msra.mxu0 0.0
      %583 = vmatprep.subr.mxu0 0.0
      %584 = vmatpush1.msra.mxu0 0.0
      %585 = vmatprep.subr.mxu0 0.0
      %586 = vmatpush1.msra.mxu0 0.0
      %587 = vmatprep.subr.mxu0 0.0
      %588 = vmatpush1.msra.mxu0 0.0
      %589 = vmatprep.subr.mxu0 0.0
      %590 = vmatpush1.msra.mxu0 0.0
      %591 = vmatprep.subr.mxu0 0.0
      %592 = vmatpush1.msra.mxu0 0.0
      %593 = vmatprep.subr.mxu0 0.0
      %594 = vmatpush1.msra.mxu0 0.0
      %595 = vmatprep.subr.mxu0 0.0
      %596 = vmatpush1.msra.mxu0 0.0
      %597 = vmatprep.subr.mxu0 0.0
      %598 = vmatpush1.msra.mxu0 0.0
      %599 = vmatprep.subr.mxu0 0.0
      %600 = vmatpush1.msra.mxu0 0.0
      %601 = vmatprep.subr.mxu0 0.0
      %602 = vmatpush1.msra.mxu0 0.0
      %603 = vmatprep.subr.mxu0 0.0
      %604 = vmatpush1.msra.mxu0 0.0
      %605 = vmatprep.subr.mxu0 0.0
      %606 = vmatpush1.msra.mxu0 0.0
      %607 = vmatprep.subr.mxu0 0.0
      %608 = vmatpush1.msra.mxu0 0.0
      %609 = vmatprep.subr.mxu0 0.0
      %610 = vmatpush1.msra.mxu0 0.0
      %611 = vmatprep.subr.mxu0 0.0
      %612 = vmatpush1.msra.mxu0 0.0
      %613 = vmatprep.subr.mxu0 0.0
      %614 = vmatpush1.msra.mxu0 0.0
      %615 = vmatprep.subr.mxu0 0.0
      %616 = vmatpush1.msra.mxu0 0.0
      %617 = vmatprep.subr.mxu0 0.0
      %618 = vmatpush1.msra.mxu0 0.0
      %619 = vmatprep.subr.mxu0 0.0
      %620 = vmatpush1.msra.mxu0 0.0
      %621 = vmatprep.subr.mxu0 0.0
      %622 = vmatpush1.msra.mxu0 0.0
      %623 = vmatprep.subr.mxu0 0.0
      %624 = vmatpush1.msra.mxu0 0.0
      %625 = vmatprep.subr.mxu0 0.0
      %626 = vmatpush1.msra.mxu0 0.0
      %627 = vmatprep.subr.mxu0 0.0
      %628 = vmatpush1.msra.mxu0 0.0
      %629 = vmatprep.subr.mxu0 0.0
      %630 = vmatpush1.msra.mxu0 0.0
      %631 = vmatprep.subr.mxu0 0.0
      %632 = vmatpush1.msra.mxu0 0.0
      %633 = vmatprep.subr.mxu0 0.0
      %634 = vmatpush1.msra.mxu0 0.0
      %635 = vmatprep.subr.mxu0 0.0
      %636 = vmatpush1.msra.mxu0 0.0
      %637 = vmatprep.mubr.f32.mxu0 0.0
      %v638 = vand.u32 %v567, 4294901760
      %v639 = vsub.f32 %v567, %v638
      %v640 = vand.u32 %v639, 4294901760
      %v641 = vsub.f32 %v639, %v640
      %v642 = vand.u32 %v641, 4294901760
      %643 = vmatmul.mubr.f32.gmra.mrb[0].mxu0 %v642
      %v644 = vpop.f32.mrb[0].mxu0
      %v645 = vadd.f32 0.0, %v644
      %v646 = vpop.f32.mrb[0].mxu0
      %647 = vdwg.mxu0
      %648 = vmatprep.subr.mxu0 0.0
      %v649 = vand.u32 %v570, 4294901760
      %v650 = vsub.f32 %v570, %v649
      %v651 = vand.u32 %v650, 4294901760
      %v652 = vsub.f32 %v650, %v651
      %v653 = vand.u32 %v652, 4294901760
      %654 = vmatpush1.msra.mxu0 %v653
      %655 = vmatprep.subr.mxu0 0.0
      %656 = vmatpush1.msra.mxu0 0.0
      %657 = vmatprep.subr.mxu0 0.0
      %658 = vmatpush1.msra.mxu0 0.0
      %659 = vmatprep.subr.mxu0 0.0
      %660 = vmatpush1.msra.mxu0 0.0
      %661 = vmatprep.subr.mxu0 0.0
      %662 = vmatpush1.msra.mxu0 0.0
      %663 = vmatprep.subr.mxu0 0.0
      %664 = vmatpush1.msra.mxu0 0.0
      %665 = vmatprep.subr.mxu0 0.0
      %666 = vmatpush1.msra.mxu0 0.0
      %667 = vmatprep.subr.mxu0 0.0
      %668 = vmatpush1.msra.mxu0 0.0
      %669 = vmatprep.subr.mxu0 0.0
      %670 = vmatpush1.msra.mxu0 0.0
      %671 = vmatprep.subr.mxu0 0.0
      %672 = vmatpush1.msra.mxu0 0.0
      %673 = vmatprep.subr.mxu0 0.0
      %674 = vmatpush1.msra.mxu0 0.0
      %675 = vmatprep.subr.mxu0 0.0
      %676 = vmatpush1.msra.mxu0 0.0
      %677 = vmatprep.subr.mxu0 0.0
      %678 = vmatpush1.msra.mxu0 0.0
      %679 = vmatprep.subr.mxu0 0.0
      %680 = vmatpush1.msra.mxu0 0.0
      %681 = vmatprep.subr.mxu0 0.0
      %682 = vmatpush1.msra.mxu0 0.0
      %683 = vmatprep.subr.mxu0 0.0
      %684 = vmatpush1.msra.mxu0 0.0
      %685 = vmatprep.subr.mxu0 0.0
      %686 = vmatpush1.msra.mxu0 0.0
      %687 = vmatprep.subr.mxu0 0.0
      %688 = vmatpush1.msra.mxu0 0.0
      %689 = vmatprep.subr.mxu0 0.0
      %690 = vmatpush1.msra.mxu0 0.0
      %691 = vmatprep.subr.mxu0 0.0
      %692 = vmatpush1.msra.mxu0 0.0
      %693 = vmatprep.subr.mxu0 0.0
      %694 = vmatpush1.msra.mxu0 0.0
      %695 = vmatprep.subr.mxu0 0.0
      %696 = vmatpush1.msra.mxu0 0.0
      %697 = vmatprep.subr.mxu0 0.0
      %698 = vmatpush1.msra.mxu0 0.0
      %699 = vmatprep.subr.mxu0 0.0
      %700 = vmatpush1.msra.mxu0 0.0
      %701 = vmatprep.subr.mxu0 0.0
      %702 = vmatpush1.msra.mxu0 0.0
      %703 = vmatprep.subr.mxu0 0.0
      %704 = vmatpush1.msra.mxu0 0.0
      %705 = vmatprep.subr.mxu0 0.0
      %706 = vmatpush1.msra.mxu0 0.0
      %707 = vmatprep.subr.mxu0 0.0
      %708 = vmatpush1.msra.mxu0 0.0
      %709 = vmatprep.subr.mxu0 0.0
      %710 = vmatpush1.msra.mxu0 0.0
      %711 = vmatprep.subr.mxu0 0.0
      %712 = vmatpush1.msra.mxu0 0.0
      %713 = vmatprep.subr.mxu0 0.0
      %714 = vmatpush1.msra.mxu0 0.0
      %715 = vmatprep.subr.mxu0 0.0
      %716 = vmatpush1.msra.mxu0 0.0
      %717 = vmatprep.mubr.f32.mxu0 0.0
      %v718 = vand.u32 %v567, 4294901760
      %719 = vmatmul.mubr.f32.gmra.mrb[0].mxu0 %v718
      %v720 = vpop.f32.mrb[0].mxu0
      %v721 = vadd.f32 %v645, %v720
      %v722 = vpop.f32.mrb[0].mxu0
      %723 = vdwg.mxu0
      %724 = vmatprep.subr.mxu0 0.0
      %v725 = vand.u32 %v570, 4294901760
      %v726 = vsub.f32 %v570, %v725
      %727 = vmatpush1.msra.mxu0 %v726
      %728 = vmatprep.subr.mxu0 0.0
      %729 = vmatpush1.msra.mxu0 0.0
      %730 = vmatprep.subr.mxu0 0.0
      %731 = vmatpush1.msra.mxu0 0.0
      %732 = vmatprep.subr.mxu0 0.0
      %733 = vmatpush1.msra.mxu0 0.0
      %734 = vmatprep.subr.mxu0 0.0
      %735 = vmatpush1.msra.mxu0 0.0
      %736 = vmatprep.subr.mxu0 0.0
      %737 = vmatpush1.msra.mxu0 0.0
      %738 = vmatprep.subr.mxu0 0.0
      %739 = vmatpush1.msra.mxu0 0.0
      %740 = vmatprep.subr.mxu0 0.0
      %741 = vmatpush1.msra.mxu0 0.0
      %742 = vmatprep.subr.mxu0 0.0
      %743 = vmatpush1.msra.mxu0 0.0
      %744 = vmatprep.subr.mxu0 0.0
      %745 = vmatpush1.msra.mxu0 0.0
      %746 = vmatprep.subr.mxu0 0.0
      %747 = vmatpush1.msra.mxu0 0.0
      %748 = vmatprep.subr.mxu0 0.0
      %749 = vmatpush1.msra.mxu0 0.0
      %750 = vmatprep.subr.mxu0 0.0
      %751 = vmatpush1.msra.mxu0 0.0
      %752 = vmatprep.subr.mxu0 0.0
      %753 = vmatpush1.msra.mxu0 0.0
      %754 = vmatprep.subr.mxu0 0.0
      %755 = vmatpush1.msra.mxu0 0.0
      %756 = vmatprep.subr.mxu0 0.0
      %757 = vmatpush1.msra.mxu0 0.0
      %758 = vmatprep.subr.mxu0 0.0
      %759 = vmatpush1.msra.mxu0 0.0
      %760 = vmatprep.subr.mxu0 0.0
      %761 = vmatpush1.msra.mxu0 0.0
      %762 = vmatprep.subr.mxu0 0.0
      %763 = vmatpush1.msra.mxu0 0.0
      %764 = vmatprep.subr.mxu0 0.0
      %765 = vmatpush1.msra.mxu0 0.0
      %766 = vmatprep.subr.mxu0 0.0
      %767 = vmatpush1.msra.mxu0 0.0
      %768 = vmatprep.subr.mxu0 0.0
      %769 = vmatpush1.msra.mxu0 0.0
      %770 = vmatprep.subr.mxu0 0.0
      %771 = vmatpush1.msra.mxu0 0.0
      %772 = vmatprep.subr.mxu0 0.0
      %773 = vmatpush1.msra.mxu0 0.0
      %774 = vmatprep.subr.mxu0 0.0
      %775 = vmatpush1.msra.mxu0 0.0
      %776 = vmatprep.subr.mxu0 0.0
      %777 = vmatpush1.msra.mxu0 0.0
      %778 = vmatprep.subr.mxu0 0.0
      %779 = vmatpush1.msra.mxu0 0.0
      %780 = vmatprep.subr.mxu0 0.0
      %781 = vmatpush1.msra.mxu0 0.0
      %782 = vmatprep.subr.mxu0 0.0
      %783 = vmatpush1.msra.mxu0 0.0
      %784 = vmatprep.subr.mxu0 0.0
      %785 = vmatpush1.msra.mxu0 0.0
      %786 = vmatprep.subr.mxu0 0.0
      %787 = vmatpush1.msra.mxu0 0.0
      %788 = vmatprep.subr.mxu0 0.0
      %789 = vmatpush1.msra.mxu0 0.0
      %790 = vmatprep.mubr.f32.mxu0 0.0
      %v791 = vand.u32 %v567, 4294901760
      %v792 = vsub.f32 %v567, %v791
      %793 = vmatmul.mubr.f32.gmra.mrb[0].mxu0 %v792
      %v794 = vpop.f32.mrb[0].mxu0
      %v795 = vadd.f32 %v721, %v794
      %v796 = vpop.f32.mrb[0].mxu0
      %797 = vdwg.mxu0
      %798 = vmatprep.subr.mxu0 0.0
      %v799 = vand.u32 %v570, 4294901760
      %800 = vmatpush1.msra.mxu0 %v799
      %801 = vmatprep.subr.mxu0 0.0
      %802 = vmatpush1.msra.mxu0 0.0
      %803 = vmatprep.subr.mxu0 0.0
      %804 = vmatpush1.msra.mxu0 0.0
      %805 = vmatprep.subr.mxu0 0.0
      %806 = vmatpush1.msra.mxu0 0.0
      %807 = vmatprep.subr.mxu0 0.0
      %808 = vmatpush1.msra.mxu0 0.0
      %809 = vmatprep.subr.mxu0 0.0
      %810 = vmatpush1.msra.mxu0 0.0
      %811 = vmatprep.subr.mxu0 0.0
      %812 = vmatpush1.msra.mxu0 0.0
      %813 = vmatprep.subr.mxu0 0.0
      %814 = vmatpush1.msra.mxu0 0.0
      %815 = vmatprep.subr.mxu0 0.0
      %816 = vmatpush1.msra.mxu0 0.0
      %817 = vmatprep.subr.mxu0 0.0
      %818 = vmatpush1.msra.mxu0 0.0
      %819 = vmatprep.subr.mxu0 0.0
      %820 = vmatpush1.msra.mxu0 0.0
      %821 = vmatprep.subr.mxu0 0.0
      %822 = vmatpush1.msra.mxu0 0.0
      %823 = vmatprep.subr.mxu0 0.0
      %824 = vmatpush1.msra.mxu0 0.0
      %825 = vmatprep.subr.mxu0 0.0
      %826 = vmatpush1.msra.mxu0 0.0
      %827 = vmatprep.subr.mxu0 0.0
      %828 = vmatpush1.msra.mxu0 0.0
      %829 = vmatprep.subr.mxu0 0.0
      %830 = vmatpush1.msra.mxu0 0.0
      %831 = vmatprep.subr.mxu0 0.0
      %832 = vmatpush1.msra.mxu0 0.0
      %833 = vmatprep.subr.mxu0 0.0
      %834 = vmatpush1.msra.mxu0 0.0
      %835 = vmatprep.subr.mxu0 0.0
      %836 = vmatpush1.msra.mxu0 0.0
      %837 = vmatprep.subr.mxu0 0.0
      %838 = vmatpush1.msra.mxu0 0.0
      %839 = vmatprep.subr.mxu0 0.0
      %840 = vmatpush1.msra.mxu0 0.0
      %841 = vmatprep.subr.mxu0 0.0
      %842 = vmatpush1.msra.mxu0 0.0
      %843 = vmatprep.subr.mxu0 0.0
      %844 = vmatpush1.msra.mxu0 0.0
      %845 = vmatprep.subr.mxu0 0.0
      %846 = vmatpush1.msra.mxu0 0.0
      %847 = vmatprep.subr.mxu0 0.0
      %848 = vmatpush1.msra.mxu0 0.0
      %849 = vmatprep.subr.mxu0 0.0
      %850 = vmatpush1.msra.mxu0 0.0
      %851 = vmatprep.subr.mxu0 0.0
      %852 = vmatpush1.msra.mxu0 0.0
      %853 = vmatprep.subr.mxu0 0.0
      %854 = vmatpush1.msra.mxu0 0.0
      %855 = vmatprep.subr.mxu0 0.0
      %856 = vmatpush1.msra.mxu0 0.0
      %857 = vmatprep.subr.mxu0 0.0
      %858 = vmatpush1.msra.mxu0 0.0
      %859 = vmatprep.subr.mxu0 0.0
      %860 = vmatpush1.msra.mxu0 0.0
      %861 = vmatprep.subr.mxu0 0.0
      %862 = vmatpush1.msra.mxu0 0.0
      %863 = vmatprep.mubr.f32.mxu0 0.0
      %v864 = vand.u32 %v567, 4294901760
      %v865 = vsub.f32 %v567, %v864
      %v866 = vand.u32 %v865, 4294901760
      %867 = vmatmul.mubr.f32.gmra.mrb[0].mxu0 %v866
      %v868 = vpop.f32.mrb[0].mxu0
      %v869 = vadd.f32 %v795, %v868
      %v870 = vpop.f32.mrb[0].mxu0
      %871 = vdwg.mxu0
      %872 = vmatprep.subr.mxu0 0.0
      %v873 = vand.u32 %v570, 4294901760
      %v874 = vsub.f32 %v570, %v873
      %v875 = vand.u32 %v874, 4294901760
      %876 = vmatpush1.msra.mxu0 %v875
      %877 = vmatprep.subr.mxu0 0.0
      %878 = vmatpush1.msra.mxu0 0.0
      %879 = vmatprep.subr.mxu0 0.0
      %880 = vmatpush1.msra.mxu0 0.0
      %881 = vmatprep.subr.mxu0 0.0
      %882 = vmatpush1.msra.mxu0 0.0
      %883 = vmatprep.subr.mxu0 0.0
      %884 = vmatpush1.msra.mxu0 0.0
      %885 = vmatprep.subr.mxu0 0.0
      %886 = vmatpush1.msra.mxu0 0.0
      %887 = vmatprep.subr.mxu0 0.0
      %888 = vmatpush1.msra.mxu0 0.0
      %889 = vmatprep.subr.mxu0 0.0
      %890 = vmatpush1.msra.mxu0 0.0
      %891 = vmatprep.subr.mxu0 0.0
      %892 = vmatpush1.msra.mxu0 0.0
      %893 = vmatprep.subr.mxu0 0.0
      %894 = vmatpush1.msra.mxu0 0.0
      %895 = vmatprep.subr.mxu0 0.0
      %896 = vmatpush1.msra.mxu0 0.0
      %897 = vmatprep.subr.mxu0 0.0
      %898 = vmatpush1.msra.mxu0 0.0
      %899 = vmatprep.subr.mxu0 0.0
      %900 = vmatpush1.msra.mxu0 0.0
      %901 = vmatprep.subr.mxu0 0.0
      %902 = vmatpush1.msra.mxu0 0.0
      %903 = vmatprep.subr.mxu0 0.0
      %904 = vmatpush1.msra.mxu0 0.0
      %905 = vmatprep.subr.mxu0 0.0
      %906 = vmatpush1.msra.mxu0 0.0
      %907 = vmatprep.subr.mxu0 0.0
      %908 = vmatpush1.msra.mxu0 0.0
      %909 = vmatprep.subr.mxu0 0.0
      %910 = vmatpush1.msra.mxu0 0.0
      %911 = vmatprep.subr.mxu0 0.0
      %912 = vmatpush1.msra.mxu0 0.0
      %913 = vmatprep.subr.mxu0 0.0
      %914 = vmatpush1.msra.mxu0 0.0
      %915 = vmatprep.subr.mxu0 0.0
      %916 = vmatpush1.msra.mxu0 0.0
      %917 = vmatprep.subr.mxu0 0.0
      %918 = vmatpush1.msra.mxu0 0.0
      %919 = vmatprep.subr.mxu0 0.0
      %920 = vmatpush1.msra.mxu0 0.0
      %921 = vmatprep.subr.mxu0 0.0
      %922 = vmatpush1.msra.mxu0 0.0
      %923 = vmatprep.subr.mxu0 0.0
      %924 = vmatpush1.msra.mxu0 0.0
      %925 = vmatprep.subr.mxu0 0.0
      %926 = vmatpush1.msra.mxu0 0.0
      %927 = vmatprep.subr.mxu0 0.0
      %928 = vmatpush1.msra.mxu0 0.0
      %929 = vmatprep.subr.mxu0 0.0
      %930 = vmatpush1.msra.mxu0 0.0
      %931 = vmatprep.subr.mxu0 0.0
      %932 = vmatpush1.msra.mxu0 0.0
      %933 = vmatprep.subr.mxu0 0.0
      %934 = vmatpush1.msra.mxu0 0.0
      %935 = vmatprep.subr.mxu0 0.0
      %936 = vmatpush1.msra.mxu0 0.0
      %937 = vmatprep.subr.mxu0 0.0
      %938 = vmatpush1.msra.mxu0 0.0
      %939 = vmatprep.mubr.f32.mxu0 0.0
      %v940 = vand.u32 %v567, 4294901760
      %941 = vmatmul.mubr.f32.gmra.mrb[0].mxu0 %v940
      %v942 = vpop.f32.mrb[0].mxu0
      %v943 = vadd.f32 %v869, %v942
      %v944 = vpop.f32.mrb[0].mxu0
      %945 = vdwg.mxu0
      %946 = vmatprep.subr.mxu0 0.0
      %v947 = vand.u32 %v570, 4294901760
      %948 = vmatpush1.msra.mxu0 %v947
      %949 = vmatprep.subr.mxu0 0.0
      %950 = vmatpush1.msra.mxu0 0.0
      %951 = vmatprep.subr.mxu0 0.0
      %952 = vmatpush1.msra.mxu0 0.0
      %953 = vmatprep.subr.mxu0 0.0
      %954 = vmatpush1.msra.mxu0 0.0
      %955 = vmatprep.subr.mxu0 0.0
      %956 = vmatpush1.msra.mxu0 0.0
      %957 = vmatprep.subr.mxu0 0.0
      %958 = vmatpush1.msra.mxu0 0.0
      %959 = vmatprep.subr.mxu0 0.0
      %960 = vmatpush1.msra.mxu0 0.0
      %961 = vmatprep.subr.mxu0 0.0
      %962 = vmatpush1.msra.mxu0 0.0
      %963 = vmatprep.subr.mxu0 0.0
      %964 = vmatpush1.msra.mxu0 0.0
      %965 = vmatprep.subr.mxu0 0.0
      %966 = vmatpush1.msra.mxu0 0.0
      %967 = vmatprep.subr.mxu0 0.0
      %968 = vmatpush1.msra.mxu0 0.0
      %969 = vmatprep.subr.mxu0 0.0
      %970 = vmatpush1.msra.mxu0 0.0
      %971 = vmatprep.subr.mxu0 0.0
      %972 = vmatpush1.msra.mxu0 0.0
      %973 = vmatprep.subr.mxu0 0.0
      %974 = vmatpush1.msra.mxu0 0.0
      %975 = vmatprep.subr.mxu0 0.0
      %976 = vmatpush1.msra.mxu0 0.0
      %977 = vmatprep.subr.mxu0 0.0
      %978 = vmatpush1.msra.mxu0 0.0
      %979 = vmatprep.subr.mxu0 0.0
      %980 = vmatpush1.msra.mxu0 0.0
      %981 = vmatprep.subr.mxu0 0.0
      %982 = vmatpush1.msra.mxu0 0.0
      %983 = vmatprep.subr.mxu0 0.0
      %984 = vmatpush1.msra.mxu0 0.0
      %985 = vmatprep.subr.mxu0 0.0
      %986 = vmatpush1.msra.mxu0 0.0
      %987 = vmatprep.subr.mxu0 0.0
      %988 = vmatpush1.msra.mxu0 0.0
      %989 = vmatprep.subr.mxu0 0.0
      %990 = vmatpush1.msra.mxu0 0.0
      %991 = vmatprep.subr.mxu0 0.0
      %992 = vmatpush1.msra.mxu0 0.0
      %993 = vmatprep.subr.mxu0 0.0
      %994 = vmatpush1.msra.mxu0 0.0
      %995 = vmatprep.subr.mxu0 0.0
      %996 = vmatpush1.msra.mxu0 0.0
      %997 = vmatprep.subr.mxu0 0.0
      %998 = vmatpush1.msra.mxu0 0.0
      %999 = vmatprep.subr.mxu0 0.0
      %1000 = vmatpush1.msra.mxu0 0.0
      %1001 = vmatprep.subr.mxu0 0.0
      %1002 = vmatpush1.msra.mxu0 0.0
      %1003 = vmatprep.subr.mxu0 0.0
      %1004 = vmatpush1.msra.mxu0 0.0
      %1005 = vmatprep.subr.mxu0 0.0
      %1006 = vmatpush1.msra.mxu0 0.0
      %1007 = vmatprep.subr.mxu0 0.0
      %1008 = vmatpush1.msra.mxu0 0.0
      %1009 = vmatprep.subr.mxu0 0.0
      %1010 = vmatpush1.msra.mxu0 0.0
      %1011 = vmatprep.mubr.f32.mxu0 0.0
      %v1012 = vand.u32 %v567, 4294901760
      %1013 = vmatmul.mubr.f32.gmra.mrb[0].mxu0 %v1012
      %v1014 = vpop.f32.mrb[0].mxu0
      %v1015 = vadd.f32 %v943, %v1014
      %v1016 = vpop.f32.mrb[0].mxu0
      %1017 = vdwg.mxu0
      %v1018 = vsub.f32 0.0, %v1015
      %v1019 = vmul.f32 %v1018, 1.442695
      %v1020 = vpow.pop %v1019
      %v1021 = vadd.f32 %v1020, 1.0
      %v1022 = vrcp.pop %v1021
      %v1024 = vrot.slane %v1022, 2
      %v1026 = vadd.f32 %v1022, %v1024
      %1027 = vst.msk [vmem:[#allocation7] sm:$0x3] %vm72, %v1026
    $region25: #{tpu_custom_call.1} parent=1 // pred_fallthru
      _
    // Predicated region
    $region26: #{tpu_custom_call.1} parent=1 // pred_check
      _
    $region27: #{tpu_custom_call.1} parent=1 // pred_check_branch
      %1029 = sbr.rel (0) target = $region29
    $region28: #{tpu_custom_call.1} parent=1 // pred_region
      %s1031 = ssub.s32 32, 32
      %1032 = vsyncadd [#allocation6], %s1031
      %s1034 = sshll.u32 [#allocation7], 4
      %s1035 = int_to_ptr.vmem [resolvable:$true] %s1034
      %1037 = dma.vmem_to_hbm [thread:$0]  %s1035, 32, %s3, [#allocation6]
    $region29: #{tpu_custom_call.1} parent=1 // pred_fallthru
      _
    // Predicated region
    $region30: #{tpu_custom_call.1} parent=1 // pred_check
      _
    $region31: #{tpu_custom_call.1} parent=1 // pred_check_branch
      %1039 = sbr.rel (0) target = $region33
    $region32: #{tpu_custom_call.1} parent=1 // pred_region
      %1040 = dma.done [#allocation6], 32
    $region33: #{tpu_custom_call.1} parent=1 // pred_fallthru
      _
    %1041 = vsyncpa [#allocation5], 1
    %1042 = vsyncpa [#allocation6], 1

</llo_original>
